<compile_context>
chip_gen: v5e
topology: v5e:2x2
jax: 0.10.0
libtpu: 0.0.40
codegen_flags: <defaults>
</compile_context>

<pallas_src>
import functools

import jax
import jax.numpy as jnp
import numpy as np
from jax.experimental import pallas as pl
from jax.experimental.pallas import tpu as pltpu

LANE = 128
SUBLANE = 8


def _round_up(n, m):
    return ((n + m - 1) // m) * m


def _pad2d(a, rows, cols):
    """Zero-pad a 2-D array up to (rows, cols)."""
    return jnp.pad(a, ((0, rows - a.shape[0]), (0, cols - a.shape[1])))


# ----------------------------------------------------------------------------- kernel


def bb_rnn_kernel(hx_ref, wf1_ref, wf2_ref, wf3_ref, wh1_ref, wh2_ref, wh3_ref,
                  bias_ref, out_ref, newh_ref, *,
                  dm, dcat, do, hpad, compute_dtype, tanh_dtype):
    """All refs are lane-dense (last dim multiple of 128); weights pre-cast to
    compute_dtype; hx arrives already in compute_dtype; biases are f32 rows of a
    single (8, Dmax) slab: [bf1, bf2, bf3, bh1, bh2, bh3, 0, 0]."""
    f32 = jnp.float32
    hx = hx_ref[...]                                   # [bm, Dcat] = pad(concat([h, x]))

    def layer(a, w_ref, brow, width):
        y = jnp.dot(a, w_ref[...], preferred_element_type=f32)
        y = y + bias_ref[brow:brow + 1, :width]
        # Cast before tanh so the EUP evaluates in tanh_dtype (bf16 on v6e/v7x).
        return jnp.tanh(y.astype(tanh_dtype)).astype(compute_dtype)

    # ---- f MLP on concat([x, h]) (wf1 rows pre-permuted to the [h, x] layout) ----
    a = layer(hx, wf1_ref, 0, dm)
    a = layer(a, wf2_ref, 1, dm)
    dh = jnp.dot(a, wf3_ref[...], preferred_element_type=f32) + bias_ref[2:3, :dcat]

    # dh lanes >= hidden_size are EXACTLY zero (zero-padded wf3 cols / bias row 2), so
    #   hx + dh == pad(concat([hidden + dh, x])) == pad(concat([new_hidden, x])).
    cat2_f32 = hx.astype(f32) + dh
    # new_hidden occupies the leading lanes -> narrow, lane-aligned writeback.
    newh_ref[...] = cat2_f32[:, :hpad].astype(newh_ref.dtype)

    # ---- h MLP on concat([new_hidden, x]) : fused layer-1 (one MXU pass) ----
    cat2 = cat2_f32.astype(compute_dtype)
    b = layer(cat2, wh1_ref, 3, dm)
    b = layer(b, wh2_ref, 4, dm)
    out = jnp.dot(b, wh3_ref[...], preferred_element_type=f32) + bias_ref[5:6, :do]
    out_ref[...] = out.astype(out_ref.dtype)


# --------------------------------------------------------------------- param prep


def prepare_params(params, input_size, hidden_size, *,
                   compute_dtype=jnp.float32, tanh_dtype=None):
    """One-time padding / casting / packing of the 12 raw parameters.

    compute_dtype: MXU operand + activation-storage dtype (bf16 recommended on
                   v5e/v6e/v7x; f32 for bit-tight checks).
    tanh_dtype:    dtype the tanh is evaluated in (default compute_dtype).
                   On v5e (no bf16 VPU/EUP) pass tanh_dtype=jnp.float32.
    """
    (wf1, bf1, wf2, bf2, wf3, bf3,
     wh1, bh1, wh2, bh2, wh3, bh3) = params
    cat = input_size + hidden_size
    mlp_size = wf2.shape[0]
    output_size = wh3.shape[1]

    Dcat = _round_up(cat, LANE)
    Dm = _round_up(mlp_size, LANE)
    Do = _round_up(output_size, LANE)
    Hpad = _round_up(hidden_size, LANE)
    assert Hpad <= Dcat
    Dmax = max(Dm, Dcat, Do)
    wdt = compute_dtype

    # f layer-1 acts on concat([x, h]) in torch order; our slab is concat([h, x]),
    # so permute wf1's rows once here (pure wrapper-side plumbing).
    wf1_hx = jnp.concatenate([wf1[input_size:cat], wf1[:input_size]], axis=0)

    weights = (
        _pad2d(wf1_hx, Dcat, Dm).astype(wdt),
        _pad2d(wf2, Dm, Dm).astype(wdt),
        # wf3 cols padded to Dcat with EXACT zeros -> dh aligns with the hx slab.
        _pad2d(wf3, Dm, Dcat).astype(wdt),
        _pad2d(wh1, Dcat, Dm).astype(wdt),    # wh1 rows already [new_h; x] order
        _pad2d(wh2, Dm, Dm).astype(wdt),
        _pad2d(wh3, Dm, Do).astype(wdt),
    )

    # Pack the six biases (kept f32: added after f32 accumulation) into one slab.
    bias = jnp.zeros((SUBLANE, Dmax), jnp.float32)
    for r, bvec in enumerate((bf1, bf2, bf3, bh1, bh2, bh3)):
        v = jnp.asarray(bvec, jnp.float32).reshape(-1)
        bias = bias.at[r, :v.shape[0]].set(v)

    return dict(
        weights=weights, bias=bias,
        dims=dict(input=input_size, hidden=hidden_size, mlp=mlp_size,
                  output=output_size, Dcat=Dcat, Dm=Dm, Do=Do, Hpad=Hpad),
        compute_dtype=compute_dtype,
        tanh_dtype=tanh_dtype if tanh_dtype is not None else compute_dtype,
    )


# --------------------------------------------------------------------------- forward


def bb_rnn_forward(x, h, prepped, *, bm=None, out_dtype=None):
    """x: [B, input_size], h: [B, hidden_size] -> (output [B, output_size],
    new_hidden [B, hidden_size]).  `prepped` comes from prepare_params."""
    B = x.shape[0]
    d = prepped["dims"]
    cd = prepped["compute_dtype"]
    td = prepped["tanh_dtype"]
    Dcat, Dm, Do, Hpad = d["Dcat"], d["Dm"], d["Do"], d["Hpad"]
    out_dtype = x.dtype if out_dtype is None else out_dtype

    # Batch tiling: big tiles (cap 512 rows) to amortize per-step pipeline overhead,
    # but at least 2 grid steps once B >= 16 so ("parallel",) uses both v7x TCs.
    if bm is None:
        n_steps = max(pl.cdiv(B, 512), 2 if B >= 16 else 1)
        bm = _round_up(pl.cdiv(B, n_steps), SUBLANE)
    else:
        bm = _round_up(bm, SUBLANE)
    n_steps = pl.cdiv(B, bm)
    B_pad = bm * n_steps
    grid = (n_steps,)

    # The ONLY per-call activation slab: pad(concat([h, x])), stored in compute_dtype
    # (bf16 halves activation DMA bytes on v5e/v6e/v7x).
    hx = _pad2d(jnp.concatenate([h, x], axis=-1).astype(cd), B_pad, Dcat)

    (wf1p, wf2p, wf3p, wh1p, wh2p, wh3p) = prepped["weights"]
    bias = prepped["bias"]

    def act_spec(ncols):
        return pl.BlockSpec((bm, ncols), lambda i: (i, 0))

    def resident_spec(a):
        # Constant block index -> Pallas keeps the tile resident (no re-DMA per step).
        return pl.BlockSpec(a.shape, lambda i: (0, 0))

    in_specs = [
        act_spec(Dcat),
        resident_spec(wf1p), resident_spec(wf2p), resident_spec(wf3p),
        resident_spec(wh1p), resident_spec(wh2p), resident_spec(wh3p),
        resident_spec(bias),
    ]
    out_specs = (act_spec(Do), act_spec(Hpad))
    out_shape = (jax.ShapeDtypeStruct((B_pad, Do), out_dtype),
                 jax.ShapeDtypeStruct((B_pad, Hpad), out_dtype))

    kernel = functools.partial(
        bb_rnn_kernel, dm=Dm, dcat=Dcat, do=Do, hpad=Hpad,
        compute_dtype=cd, tanh_dtype=td)

    out_pad, newh_pad = pl.pallas_call(
        kernel,
        grid=grid,
        in_specs=in_specs,
        out_specs=out_specs,
        out_shape=out_shape,
        compiler_params=pltpu.CompilerParams(
            dimension_semantics=("parallel",)),    # batch tiles shard across v7x TCs
    )(hx, wf1p, wf2p, wf3p, wh1p, wh2p, wh3p, bias)

    return out_pad[:B, :d["output"]], newh_pad[:B, :d["hidden"]]


# ----------------------------------------------------------------- params / reference


def make_params(key, input_size, hidden_size, mlp_size, output_size):
    """Deterministic init. Weights stored as (in, out) so y = x @ W + b
    (numerically identical to PyTorch's x @ W.T + b). Biases are (1, out)."""
    ks = jax.random.split(key, 12)
    cat = input_size + hidden_size

    def w(k, i, o):
        return (jax.random.normal(k, (i, o), jnp.float32) / np.sqrt(i)).astype(jnp.float32)

    def b(k, o):
        return (0.01 * jax.random.normal(k, (1, o), jnp.float32)).astype(jnp.float32)

    wf1 = w(ks[0], cat, mlp_size); bf1 = b(ks[1], mlp_size)
    wf2 = w(ks[2], mlp_size, mlp_size); bf2 = b(ks[3], mlp_size)
    wf3 = w(ks[4], mlp_size, hidden_size); bf3 = b(ks[5], hidden_size)

    wh1 = w(ks[6], cat, mlp_size); bh1 = b(ks[7], mlp_size)
    wh2 = w(ks[8], mlp_size, mlp_size); bh2 = b(ks[9], mlp_size)
    wh3 = w(ks[10], mlp_size, output_size); bh3 = b(ks[11], output_size)

    return (wf1, bf1, wf2, bf2, wf3, bf3,
            wh1, bh1, wh2, bh2, wh3, bh3)


def bb_rnn_reference(x, h, params, compute_dtype=jnp.float32, tanh_dtype=None):
    """Pure-JAX reference mirroring the PyTorch forward, with the same low-precision
    choices as the kernel (operand pre-cast, f32 accumulation, tanh_dtype)."""
    td = compute_dtype if tanh_dtype is None else tanh_dtype
    (wf1, bf1, wf2, bf2, wf3, bf3,
     wh1, bh1, wh2, bh2, wh3, bh3) = params

    # Mirror the wrapper's activation pre-cast rounding.
    xc = x.astype(compute_dtype).astype(jnp.float32)
    hc = h.astype(compute_dtype).astype(jnp.float32)

    def lin(a, w, b_):
        return jnp.dot(a.astype(compute_dtype), w.astype(compute_dtype),
                       preferred_element_type=jnp.float32) + b_

    def act(y):
        return jnp.tanh(y.astype(td)).astype(jnp.float32)

    cat1 = jnp.concatenate([xc, hc], axis=-1)
    a = act(lin(cat1, wf1, bf1))
    a = act(lin(a, wf2, bf2))
    dh = lin(a, wf3, bf3)
    new_h = hc + dh
    cat2 = jnp.concatenate([new_h, xc], axis=-1)
    bb = act(lin(cat2, wh1, bh1))
    bb = act(lin(bb, wh2, bh2))
    out = lin(bb, wh3, bh3)
    return out, new_h


# ------------------------------------------------------------------------------ main


if __name__ == "__main__":
    # Small, BB_RNN-consistent shapes (num_hidden_layer = 2 -> 3 linear layers per MLP).
    batch = 16
    input_size = 16
    hidden_size = 32
    mlp_size = 64
    output_size = 8

    key = jax.random.PRNGKey(0)
    kx, kh, kp = jax.random.split(key, 3)
    x = jax.random.normal(kx, (batch, input_size), jnp.float32)
    hidden = jax.random.normal(kh, (batch, hidden_size), jnp.float32)
    params = make_params(kp, input_size, hidden_size, mlp_size, output_size)

    # f32 path (tight tolerance).
    prep_f32 = prepare_params(params, input_size, hidden_size,
                              compute_dtype=jnp.float32)
    out, new_h = jax.block_until_ready(bb_rnn_forward(x, hidden, prep_f32))
    ref_out, ref_new_h = bb_rnn_reference(x, hidden, params)
    np.testing.assert_allclose(np.asarray(out), np.asarray(ref_out), rtol=1e-5, atol=1e-5)
    np.testing.assert_allclose(np.asarray(new_h), np.asarray(ref_new_h), rtol=1e-5, atol=1e-5)

    # bf16 operand/activation path (f32 accumulation) -- the v6e/v7x throughput config.
    # (On v5e use compute_dtype=bf16 but tanh_dtype=jnp.float32: no bf16 VPU/EUP there.)
    prep_bf16 = prepare_params(params, input_size, hidden_size,
                               compute_dtype=jnp.bfloat16)
    out_bf, new_h_bf = jax.block_until_ready(bb_rnn_forward(x, hidden, prep_bf16))
    ref_out_bf, ref_new_h_bf = bb_rnn_reference(x, hidden, params,
                                                compute_dtype=jnp.bfloat16)
    np.testing.assert_allclose(np.asarray(out_bf), np.asarray(ref_out_bf),
                               rtol=2e-2, atol=2e-2)
    np.testing.assert_allclose(np.asarray(new_h_bf), np.asarray(ref_new_h_bf),
                               rtol=2e-2, atol=2e-2)

    print("KERNEL_OK")
</pallas_src>

<mosaic_0001>
module attributes {stable_mosaic.version = 11 : i64} {
  func.func @bb_rnn_kernel(%arg0: i32, %arg1: memref<8x128xf32, #tpu.memory_space<vmem>>, %arg2: memref<128x128xf32, #tpu.memory_space<vmem>>, %arg3: memref<128x128xf32, #tpu.memory_space<vmem>>, %arg4: memref<128x128xf32, #tpu.memory_space<vmem>>, %arg5: memref<128x128xf32, #tpu.memory_space<vmem>>, %arg6: memref<128x128xf32, #tpu.memory_space<vmem>>, %arg7: memref<128x128xf32, #tpu.memory_space<vmem>>, %arg8: memref<8x128xf32, #tpu.memory_space<vmem>>, %arg9: memref<8x128xf32, #tpu.memory_space<vmem>>, %arg10: memref<8x128xf32, #tpu.memory_space<vmem>>) attributes {dimension_semantics = [#tpu.dimension_semantics<parallel>], iteration_bounds = array<i64: 2>, scalar_prefetch = 0 : i64, scratch_operands = 0 : i64, tpu.core_type = #tpu.core_type<tc>, window_params = [{transform_indices = @transform_0, window_bounds = array<i64: 8, 128>}, {pipeline_mode = #tpu.pipeline_mode<synchronous>, transform_indices = @transform_1, window_bounds = array<i64: 128, 128>}, {pipeline_mode = #tpu.pipeline_mode<synchronous>, transform_indices = @transform_2, window_bounds = array<i64: 128, 128>}, {pipeline_mode = #tpu.pipeline_mode<synchronous>, transform_indices = @transform_3, window_bounds = array<i64: 128, 128>}, {pipeline_mode = #tpu.pipeline_mode<synchronous>, transform_indices = @transform_4, window_bounds = array<i64: 128, 128>}, {pipeline_mode = #tpu.pipeline_mode<synchronous>, transform_indices = @transform_5, window_bounds = array<i64: 128, 128>}, {pipeline_mode = #tpu.pipeline_mode<synchronous>, transform_indices = @transform_6, window_bounds = array<i64: 128, 128>}, {pipeline_mode = #tpu.pipeline_mode<synchronous>, transform_indices = @transform_7, window_bounds = array<i64: 8, 128>}, {transform_indices = @transform_8, window_bounds = array<i64: 8, 128>}, {transform_indices = @transform_9, window_bounds = array<i64: 8, 128>}]} {
    %c0 = arith.constant 0 : index
    %c0_0 = arith.constant 0 : index
    %0 = vector.load %arg1[%c0, %c0_0] : memref<8x128xf32, #tpu.memory_space<vmem>>, vector<8x128xf32>
    %c0_1 = arith.constant 0 : index
    %c0_2 = arith.constant 0 : index
    %1 = vector.load %arg2[%c0_1, %c0_2] : memref<128x128xf32, #tpu.memory_space<vmem>>, vector<128x128xf32>
    %cst = arith.constant dense<0.000000e+00> : vector<8x128xf32>
    %2 = tpu.matmul %0, %1, %cst {dimension_numbers = #tpu.dot_dimension_numbers<[1], [0], [0], [1], [0, 0, 1, 1], [], []>} : vector<8x128xf32>, vector<128x128xf32>, vector<8x128xf32> -> vector<8x128xf32>
    %c0_3 = arith.constant 0 : index
    %c0_4 = arith.constant 0 : index
    %3 = vector.load %arg8[%c0_3, %c0_4] : memref<8x128xf32, #tpu.memory_space<vmem>>, vector<1x128xf32>
    %4 = vector.broadcast %3 : vector<1x128xf32> to vector<8x128xf32>
    %5 = arith.addf %2, %4 : vector<8x128xf32>
    %6 = math.tanh %5 : vector<8x128xf32>
    %c0_5 = arith.constant 0 : index
    %c0_6 = arith.constant 0 : index
    %7 = vector.load %arg3[%c0_5, %c0_6] : memref<128x128xf32, #tpu.memory_space<vmem>>, vector<128x128xf32>
    %cst_7 = arith.constant dense<0.000000e+00> : vector<8x128xf32>
    %8 = tpu.matmul %6, %7, %cst_7 {dimension_numbers = #tpu.dot_dimension_numbers<[1], [0], [0], [1], [0, 0, 1, 1], [], []>} : vector<8x128xf32>, vector<128x128xf32>, vector<8x128xf32> -> vector<8x128xf32>
    %c1 = arith.constant 1 : index
    %c0_8 = arith.constant 0 : index
    %9 = vector.load %arg8[%c1, %c0_8] : memref<8x128xf32, #tpu.memory_space<vmem>>, vector<1x128xf32>
    %10 = vector.broadcast %9 : vector<1x128xf32> to vector<8x128xf32>
    %11 = arith.addf %8, %10 : vector<8x128xf32>
    %12 = math.tanh %11 : vector<8x128xf32>
    %c0_9 = arith.constant 0 : index
    %c0_10 = arith.constant 0 : index
    %13 = vector.load %arg4[%c0_9, %c0_10] : memref<128x128xf32, #tpu.memory_space<vmem>>, vector<128x128xf32>
    %cst_11 = arith.constant dense<0.000000e+00> : vector<8x128xf32>
    %14 = tpu.matmul %12, %13, %cst_11 {dimension_numbers = #tpu.dot_dimension_numbers<[1], [0], [0], [1], [0, 0, 1, 1], [], []>} : vector<8x128xf32>, vector<128x128xf32>, vector<8x128xf32> -> vector<8x128xf32>
    %c2 = arith.constant 2 : index
    %c0_12 = arith.constant 0 : index
    %15 = vector.load %arg8[%c2, %c0_12] : memref<8x128xf32, #tpu.memory_space<vmem>>, vector<1x128xf32>
    %16 = vector.broadcast %15 : vector<1x128xf32> to vector<8x128xf32>
    %17 = arith.addf %14, %16 : vector<8x128xf32>
    %18 = arith.addf %0, %17 : vector<8x128xf32>
    %c0_13 = arith.constant 0 : index
    %c0_14 = arith.constant 0 : index
    %19 = vector.load %arg10[%c0_13, %c0_14] : memref<8x128xf32, #tpu.memory_space<vmem>>, vector<8x128xf32>
    tpu.vector_store %arg10[%c0_13, %c0_14], %18 {strides = array<i32>} : memref<8x128xf32, #tpu.memory_space<vmem>>, vector<8x128xf32>,
    %c0_15 = arith.constant 0 : index
    %c0_16 = arith.constant 0 : index
    %20 = vector.load %arg5[%c0_15, %c0_16] : memref<128x128xf32, #tpu.memory_space<vmem>>, vector<128x128xf32>
    %cst_17 = arith.constant dense<0.000000e+00> : vector<8x128xf32>
    %21 = tpu.matmul %18, %20, %cst_17 {dimension_numbers = #tpu.dot_dimension_numbers<[1], [0], [0], [1], [0, 0, 1, 1], [], []>} : vector<8x128xf32>, vector<128x128xf32>, vector<8x128xf32> -> vector<8x128xf32>
    %c3 = arith.constant 3 : index
    %c0_18 = arith.constant 0 : index
    %22 = vector.load %arg8[%c3, %c0_18] : memref<8x128xf32, #tpu.memory_space<vmem>>, vector<1x128xf32>
    %23 = vector.broadcast %22 : vector<1x128xf32> to vector<8x128xf32>
    %24 = arith.addf %21, %23 : vector<8x128xf32>
    %25 = math.tanh %24 : vector<8x128xf32>
    %c0_19 = arith.constant 0 : index
    %c0_20 = arith.constant 0 : index
    %26 = vector.load %arg6[%c0_19, %c0_20] : memref<128x128xf32, #tpu.memory_space<vmem>>, vector<128x128xf32>
    %cst_21 = arith.constant dense<0.000000e+00> : vector<8x128xf32>
    %27 = tpu.matmul %25, %26, %cst_21 {dimension_numbers = #tpu.dot_dimension_numbers<[1], [0], [0], [1], [0, 0, 1, 1], [], []>} : vector<8x128xf32>, vector<128x128xf32>, vector<8x128xf32> -> vector<8x128xf32>
    %c4 = arith.constant 4 : index
    %c0_22 = arith.constant 0 : index
    %28 = vector.load %arg8[%c4, %c0_22] : memref<8x128xf32, #tpu.memory_space<vmem>>, vector<1x128xf32>
    %29 = vector.broadcast %28 : vector<1x128xf32> to vector<8x128xf32>
    %30 = arith.addf %27, %29 : vector<8x128xf32>
    %31 = math.tanh %30 : vector<8x128xf32>
    %c0_23 = arith.constant 0 : index
    %c0_24 = arith.constant 0 : index
    %32 = vector.load %arg7[%c0_23, %c0_24] : memref<128x128xf32, #tpu.memory_space<vmem>>, vector<128x128xf32>
    %cst_25 = arith.constant dense<0.000000e+00> : vector<8x128xf32>
    %33 = tpu.matmul %31, %32, %cst_25 {dimension_numbers = #tpu.dot_dimension_numbers<[1], [0], [0], [1], [0, 0, 1, 1], [], []>} : vector<8x128xf32>, vector<128x128xf32>, vector<8x128xf32> -> vector<8x128xf32>
    %c5 = arith.constant 5 : index
    %c0_26 = arith.constant 0 : index
    %34 = vector.load %arg8[%c5, %c0_26] : memref<8x128xf32, #tpu.memory_space<vmem>>, vector<1x128xf32>
    %35 = vector.broadcast %34 : vector<1x128xf32> to vector<8x128xf32>
    %36 = arith.addf %33, %35 : vector<8x128xf32>
    %c0_27 = arith.constant 0 : index
    %c0_28 = arith.constant 0 : index
    %37 = vector.load %arg9[%c0_27, %c0_28] : memref<8x128xf32, #tpu.memory_space<vmem>>, vector<8x128xf32>
    tpu.vector_store %arg9[%c0_27, %c0_28], %36 {strides = array<i32>} : memref<8x128xf32, #tpu.memory_space<vmem>>, vector<8x128xf32>,
    return
  }
  func.func @transform_0(%arg0: i32) -> (i32, i32) {
    %c0_i32 = arith.constant 0 : i32
    %c0_i32_0 = arith.constant 0 : i32
    return %arg0, %c0_i32 : i32, i32
  }
  func.func @transform_1(%arg0: i32) -> (i32, i32) {
    %c0_i32 = arith.constant 0 : i32
    %c0_i32_0 = arith.constant 0 : i32
    %c0_i32_1 = arith.constant 0 : i32
    return %c0_i32, %c0_i32_0 : i32, i32
  }
  func.func @transform_2(%arg0: i32) -> (i32, i32) {
    %c0_i32 = arith.constant 0 : i32
    %c0_i32_0 = arith.constant 0 : i32
    %c0_i32_1 = arith.constant 0 : i32
    return %c0_i32, %c0_i32_0 : i32, i32
  }
  func.func @transform_3(%arg0: i32) -> (i32, i32) {
    %c0_i32 = arith.constant 0 : i32
    %c0_i32_0 = arith.constant 0 : i32
    %c0_i32_1 = arith.constant 0 : i32
    return %c0_i32, %c0_i32_0 : i32, i32
  }
  func.func @transform_4(%arg0: i32) -> (i32, i32) {
    %c0_i32 = arith.constant 0 : i32
    %c0_i32_0 = arith.constant 0 : i32
    %c0_i32_1 = arith.constant 0 : i32
    return %c0_i32, %c0_i32_0 : i32, i32
  }
  func.func @transform_5(%arg0: i32) -> (i32, i32) {
    %c0_i32 = arith.constant 0 : i32
    %c0_i32_0 = arith.constant 0 : i32
    %c0_i32_1 = arith.constant 0 : i32
    return %c0_i32, %c0_i32_0 : i32, i32
  }
  func.func @transform_6(%arg0: i32) -> (i32, i32) {
    %c0_i32 = arith.constant 0 : i32
    %c0_i32_0 = arith.constant 0 : i32
    %c0_i32_1 = arith.constant 0 : i32
    return %c0_i32, %c0_i32_0 : i32, i32
  }
  func.func @transform_7(%arg0: i32) -> (i32, i32) {
    %c0_i32 = arith.constant 0 : i32
    %c0_i32_0 = arith.constant 0 : i32
    %c0_i32_1 = arith.constant 0 : i32
    return %c0_i32, %c0_i32_0 : i32, i32
  }
  func.func @transform_8(%arg0: i32) -> (i32, i32) {
    %c0_i32 = arith.constant 0 : i32
    %c0_i32_0 = arith.constant 0 : i32
    return %arg0, %c0_i32 : i32, i32
  }
  func.func @transform_9(%arg0: i32) -> (i32, i32) {
    %c0_i32 = arith.constant 0 : i32
    %c0_i32_0 = arith.constant 0 : i32
    return %arg0, %c0_i32 : i32, i32
  }
}

</mosaic_0001>

<llo_original>
// kernel: tpu_custom_call.1
$region0: #{tpu_custom_call.1}
  #allocation0 [shape = 'u32[]', space=smem, size = 0x4, offset = 0x4, fixed_abs, tag = 'smem constant byte address 0x4 - core index']
  #allocation1 [shape = 'u32[72,128]{1,0:T(1,128)}', space=vmem, size = 0x9000, scoped, tag = 'internal scratch']
  %s0 = inlined_call_operand.hbm [shape: f32[16,128], index: 0, kind: input, shape index: {}]
  %s1 = inlined_call_operand.hbm [shape: f32[128,128], index: 1, kind: input, shape index: {}]
  %s2 = inlined_call_operand.hbm [shape: f32[128,128], index: 2, kind: input, shape index: {}]
  %s3 = inlined_call_operand.hbm [shape: f32[128,128], index: 3, kind: input, shape index: {}]
  %s4 = inlined_call_operand.hbm [shape: f32[128,128], index: 4, kind: input, shape index: {}]
  %s5 = inlined_call_operand.hbm [shape: f32[128,128], index: 5, kind: input, shape index: {}]
  %s6 = inlined_call_operand.hbm [shape: f32[128,128], index: 6, kind: input, shape index: {}]
  %s7 = inlined_call_operand.hbm [shape: f32[8,128], index: 7, kind: input, shape index: {}]
  %s8 = inlined_call_operand.hbm [shape: f32[16,128], index: 8, kind: output, shape index: {0}]
  %s9 = inlined_call_operand.hbm [shape: f32[16,128], index: 9, kind: output, shape index: {1}]
  %10 = xla_tuple %s8, %s9
  %s11 = sld [smem:[#allocation0]]
  $region105: #{tpu_custom_call.1} parent=0
    _
  %s13 = ssub.s32 1, %s11
  %s14 = scalar_select 0, %s13, %s11
  $region1: #{tpu_custom_call.1} parent=0
    #allocation2 [shape = 'u8[8192]{0}', space=vmem, size = 0x2000, scoped, tag = 'input window, operand 0']
    #allocation3 [shape = 's32[2]{0}', space=sflag, size = 0x8, scoped, tag = 'scoped memory for tpu_custom_call.1']
    #allocation4 [shape = 's32[2]{0}', space=sflag, size = 0x8, scoped, tag = 'scoped memory for tpu_custom_call.1']
    #allocation5 [shape = 'u8[65536]{0}', space=vmem, size = 0x10000, scoped, tag = 'input window, operand 1, single buffered']
    #allocation6 [shape = 's32[1]{0}', space=sflag, size = 0x4, scoped, tag = 'scoped memory for tpu_custom_call.1']
    #allocation7 [shape = 'u8[65536]{0}', space=vmem, size = 0x10000, scoped, tag = 'input window, operand 2, single buffered']
    #allocation8 [shape = 'u8[65536]{0}', space=vmem, size = 0x10000, scoped, tag = 'input window, operand 3, single buffered']
    #allocation9 [shape = 's32[1]{0}', space=sflag, size = 0x4, scoped, tag = 'scoped memory for tpu_custom_call.1']
    #allocation10 [shape = 'u8[65536]{0}', space=vmem, size = 0x10000, scoped, tag = 'input window, operand 4, single buffered']
    #allocation11 [shape = 'u8[65536]{0}', space=vmem, size = 0x10000, scoped, tag = 'input window, operand 5, single buffered']
    #allocation12 [shape = 's32[1]{0}', space=sflag, size = 0x4, scoped, tag = 'scoped memory for tpu_custom_call.1']
    #allocation13 [shape = 'u8[65536]{0}', space=vmem, size = 0x10000, scoped, tag = 'input window, operand 6, single buffered']
    #allocation14 [shape = 'u8[4096]{0}', space=vmem, size = 0x1000, scoped, tag = 'input window, operand 7, single buffered']
    #allocation15 [shape = 's32[1]{0}', space=sflag, size = 0x4, scoped, tag = 'scoped memory for tpu_custom_call.1']
    #allocation16 [shape = 'u8[8192]{0}', space=vmem, size = 0x2000, scoped, tag = 'output window, operand 0']
    #allocation17 [shape = 'u8[8192]{0}', space=vmem, size = 0x2000, scoped, tag = 'output window, operand 1']
    #allocation18 [shape = 's32[2]{0}', space=sflag, size = 0x8, scoped, tag = 'scoped memory for tpu_custom_call.1']
    %15 = vsyncpa [#allocation3], 0
    %s16 = scalar_lea.sflag [#allocation3], 1
    %17 = vsyncpa %s16, 0
    %18 = vsyncpa [#allocation6], 0
    %19 = vsyncpa [#allocation9], 0
    %20 = vsyncpa [#allocation12], 0
    %21 = vsyncpa [#allocation15], 0
    %22 = vsyncpa [#allocation4], 0
    %s23 = scalar_lea.sflag [#allocation4], 1
    %24 = vsyncpa %s23, 0
    %25 = vsyncpa [#allocation18], 0
    %s26 = scalar_lea.sflag [#allocation18], 1
    %27 = vsyncpa %s26, 0
    loop: start=0, step=1, limit=4
    $region2: #{tpu_custom_call.1} parent=1 // loop_pre_header
      _
    $region3: #{tpu_custom_call.1} parent=1 // loop_header
      %s29 = sphi 0, %s33
      %p30 = scmp.ge.s32.totalorder %s29, 4
      %s39 = sphi 0, %s41
      %s42 = sphi 0, %s39
      %s43 = sphi 0, %s42
      %s59 = sphi 0, %s43
      %s63 = sphi 0, %s63
      %s65 = sphi 0, %s63
      %s66 = sphi 0, %s65
      %s80 = sphi 0, %s66
      %s84 = sphi 0, %s84
      %s86 = sphi 0, %s84
      %s87 = sphi 0, %s86
      %s101 = sphi 0, %s87
      %s105 = sphi 0, %s105
      %s107 = sphi 0, %s105
      %s108 = sphi 0, %s107
      %s122 = sphi 0, %s108
      %s126 = sphi 0, %s126
      %s128 = sphi 0, %s126
      %s129 = sphi 0, %s128
      %s143 = sphi 0, %s129
      %s147 = sphi 0, %s147
      %s149 = sphi 0, %s147
      %s150 = sphi 0, %s149
      %s164 = sphi 0, %s150
      %s168 = sphi 0, %s168
      %s170 = sphi 0, %s168
      %s171 = sphi 0, %s170
      %s185 = sphi 0, %s171
      %s189 = sphi 0, %s189
      %s191 = sphi 0, %s189
      %s192 = sphi 0, %s191
      %s206 = sphi 0, %s192
      %s212 = sphi 0, %s214
      %s215 = sphi 0, %s212
      %s216 = sphi 0, %s215
      %s232 = sphi 0, %s216
      %s238 = sphi 0, %s240
      %s241 = sphi 0, %s238
      %s242 = sphi 0, %s241
      %s258 = sphi 0, %s242
    $region4: #{tpu_custom_call.1} parent=1 // loop_header_branch
      %32 = sbr.rel (%p30) target = $region8
    $region5: #{tpu_custom_call.1} parent=1 // loop_body
      %s34 = ssub.s32 %s29, 1
      %s35 = ssub.s32 %s29, 2
      %s36 = sadd.s32 %s29, 1
      %s37 = ssub.s32 %s29, %s36
      %p38 = scmp.eq.s32.totalorder %s37, 0
      %s40 = sadd.s32 %s39, 1
      %s41 = scalar_select %p38, %s39, %s40
      %p44 = pneg %p38
      %p45 = scmp.eq.s32.totalorder %s29, 1
      %p46 = por %p44, %p45
      %p47 = scmp.ne.s32.totalorder %s39, %s42
      %p48 = scmp.eq.s32.totalorder %s29, 0
      %p49 = por %p47, %p48
      %p50 = scmp.ne.s32.totalorder %s39, %s42
      %p51 = scmp.eq.s32.totalorder %s34, 1
      %p52 = por %p50, %p51
      %p53 = scmp.ne.s32.totalorder %s42, %s43
      %p54 = scmp.eq.s32.totalorder %s34, 0
      %p55 = por %p53, %p54
      %p56 = scmp.ne.s32.totalorder %s42, %s43
      %p57 = scmp.eq.s32.totalorder %s35, 1
      %p58 = por %p56, %p57
      %p60 = scmp.ne.s32.totalorder %s43, %s59
      %p61 = scmp.eq.s32.totalorder %s35, 0
      %p62 = por %p60, %p61
      %s64 = sadd.s32 %s63, 1
      %p67 = scmp.eq.s32.totalorder %s29, 1
      %p68 = scmp.ne.s32.totalorder %s63, %s65
      %p69 = scmp.eq.s32.totalorder %s29, 0
      %p70 = por %p68, %p69
      %p71 = scmp.ne.s32.totalorder %s63, %s65
      %p72 = scmp.eq.s32.totalorder %s34, 1
      %p73 = por %p71, %p72
      %p74 = scmp.ne.s32.totalorder %s65, %s66
      %p75 = scmp.eq.s32.totalorder %s34, 0
      %p76 = por %p74, %p75
      %p77 = scmp.ne.s32.totalorder %s65, %s66
      %p78 = scmp.eq.s32.totalorder %s35, 1
      %p79 = por %p77, %p78
      %p81 = scmp.ne.s32.totalorder %s66, %s80
      %p82 = scmp.eq.s32.totalorder %s35, 0
      %p83 = por %p81, %p82
      %s85 = sadd.s32 %s84, 1
      %p88 = scmp.eq.s32.totalorder %s29, 1
      %p89 = scmp.ne.s32.totalorder %s84, %s86
      %p90 = scmp.eq.s32.totalorder %s29, 0
      %p91 = por %p89, %p90
      %p92 = scmp.ne.s32.totalorder %s84, %s86
      %p93 = scmp.eq.s32.totalorder %s34, 1
      %p94 = por %p92, %p93
      %p95 = scmp.ne.s32.totalorder %s86, %s87
      %p96 = scmp.eq.s32.totalorder %s34, 0
      %p97 = por %p95, %p96
      %p98 = scmp.ne.s32.totalorder %s86, %s87
      %p99 = scmp.eq.s32.totalorder %s35, 1
      %p100 = por %p98, %p99
      %p102 = scmp.ne.s32.totalorder %s87, %s101
      %p103 = scmp.eq.s32.totalorder %s35, 0
      %p104 = por %p102, %p103
      %s106 = sadd.s32 %s105, 1
      %p109 = scmp.eq.s32.totalorder %s29, 1
      %p110 = scmp.ne.s32.totalorder %s105, %s107
      %p111 = scmp.eq.s32.totalorder %s29, 0
      %p112 = por %p110, %p111
      %p113 = scmp.ne.s32.totalorder %s105, %s107
      %p114 = scmp.eq.s32.totalorder %s34, 1
      %p115 = por %p113, %p114
      %p116 = scmp.ne.s32.totalorder %s107, %s108
      %p117 = scmp.eq.s32.totalorder %s34, 0
      %p118 = por %p116, %p117
      %p119 = scmp.ne.s32.totalorder %s107, %s108
      %p120 = scmp.eq.s32.totalorder %s35, 1
      %p121 = por %p119, %p120
      %p123 = scmp.ne.s32.totalorder %s108, %s122
      %p124 = scmp.eq.s32.totalorder %s35, 0
      %p125 = por %p123, %p124
      %s127 = sadd.s32 %s126, 1
      %p130 = scmp.eq.s32.totalorder %s29, 1
      %p131 = scmp.ne.s32.totalorder %s126, %s128
      %p132 = scmp.eq.s32.totalorder %s29, 0
      %p133 = por %p131, %p132
      %p134 = scmp.ne.s32.totalorder %s126, %s128
      %p135 = scmp.eq.s32.totalorder %s34, 1
      %p136 = por %p134, %p135
      %p137 = scmp.ne.s32.totalorder %s128, %s129
      %p138 = scmp.eq.s32.totalorder %s34, 0
      %p139 = por %p137, %p138
      %p140 = scmp.ne.s32.totalorder %s128, %s129
      %p141 = scmp.eq.s32.totalorder %s35, 1
      %p142 = por %p140, %p141
      %p144 = scmp.ne.s32.totalorder %s129, %s143
      %p145 = scmp.eq.s32.totalorder %s35, 0
      %p146 = por %p144, %p145
      %s148 = sadd.s32 %s147, 1
      %p151 = scmp.eq.s32.totalorder %s29, 1
      %p152 = scmp.ne.s32.totalorder %s147, %s149
      %p153 = scmp.eq.s32.totalorder %s29, 0
      %p154 = por %p152, %p153
      %p155 = scmp.ne.s32.totalorder %s147, %s149
      %p156 = scmp.eq.s32.totalorder %s34, 1
      %p157 = por %p155, %p156
      %p158 = scmp.ne.s32.totalorder %s149, %s150
      %p159 = scmp.eq.s32.totalorder %s34, 0
      %p160 = por %p158, %p159
      %p161 = scmp.ne.s32.totalorder %s149, %s150
      %p162 = scmp.eq.s32.totalorder %s35, 1
      %p163 = por %p161, %p162
      %p165 = scmp.ne.s32.totalorder %s150, %s164
      %p166 = scmp.eq.s32.totalorder %s35, 0
      %p167 = por %p165, %p166
      %s169 = sadd.s32 %s168, 1
      %p172 = scmp.eq.s32.totalorder %s29, 1
      %p173 = scmp.ne.s32.totalorder %s168, %s170
      %p174 = scmp.eq.s32.totalorder %s29, 0
      %p175 = por %p173, %p174
      %p176 = scmp.ne.s32.totalorder %s168, %s170
      %p177 = scmp.eq.s32.totalorder %s34, 1
      %p178 = por %p176, %p177
      %p179 = scmp.ne.s32.totalorder %s170, %s171
      %p180 = scmp.eq.s32.totalorder %s34, 0
      %p181 = por %p179, %p180
      %p182 = scmp.ne.s32.totalorder %s170, %s171
      %p183 = scmp.eq.s32.totalorder %s35, 1
      %p184 = por %p182, %p183
      %p186 = scmp.ne.s32.totalorder %s171, %s185
      %p187 = scmp.eq.s32.totalorder %s35, 0
      %p188 = por %p186, %p187
      %s190 = sadd.s32 %s189, 1
      %p193 = scmp.eq.s32.totalorder %s29, 1
      %p194 = scmp.ne.s32.totalorder %s189, %s191
      %p195 = scmp.eq.s32.totalorder %s29, 0
      %p196 = por %p194, %p195
      %p197 = scmp.ne.s32.totalorder %s189, %s191
      %p198 = scmp.eq.s32.totalorder %s34, 1
      %p199 = por %p197, %p198
      %p200 = scmp.ne.s32.totalorder %s191, %s192
      %p201 = scmp.eq.s32.totalorder %s34, 0
      %p202 = por %p200, %p201
      %p203 = scmp.ne.s32.totalorder %s191, %s192
      %p204 = scmp.eq.s32.totalorder %s35, 1
      %p205 = por %p203, %p204
      %p207 = scmp.ne.s32.totalorder %s192, %s206
      %p208 = scmp.eq.s32.totalorder %s35, 0
      %p209 = por %p207, %p208
      %s210 = ssub.s32 %s29, %s36
      %p211 = scmp.eq.s32.totalorder %s210, 0
      %s213 = sadd.s32 %s212, 1
      %s214 = scalar_select %p211, %s212, %s213
      %p217 = pneg %p211
      %p218 = scmp.eq.s32.totalorder %s29, 1
      %p219 = por %p217, %p218
      %p220 = scmp.ne.s32.totalorder %s212, %s215
      %p221 = scmp.eq.s32.totalorder %s29, 0
      %p222 = por %p220, %p221
      %p223 = scmp.ne.s32.totalorder %s212, %s215
      %p224 = scmp.eq.s32.totalorder %s34, 1
      %p225 = por %p223, %p224
      %p226 = scmp.ne.s32.totalorder %s215, %s216
      %p227 = scmp.eq.s32.totalorder %s34, 0
      %p228 = por %p226, %p227
      %p229 = scmp.ne.s32.totalorder %s215, %s216
      %p230 = scmp.eq.s32.totalorder %s35, 1
      %p231 = por %p229, %p230
      %p233 = scmp.ne.s32.totalorder %s216, %s232
      %p234 = scmp.eq.s32.totalorder %s35, 0
      %p235 = por %p233, %p234
      %s236 = ssub.s32 %s29, %s36
      %p237 = scmp.eq.s32.totalorder %s236, 0
      %s239 = sadd.s32 %s238, 1
      %s240 = scalar_select %p237, %s238, %s239
      %p243 = pneg %p237
      %p244 = scmp.eq.s32.totalorder %s29, 1
      %p245 = por %p243, %p244
      %p246 = scmp.ne.s32.totalorder %s238, %s241
      %p247 = scmp.eq.s32.totalorder %s29, 0
      %p248 = por %p246, %p247
      %p249 = scmp.ne.s32.totalorder %s238, %s241
      %p250 = scmp.eq.s32.totalorder %s34, 1
      %p251 = por %p249, %p250
      %p252 = scmp.ne.s32.totalorder %s241, %s242
      %p253 = scmp.eq.s32.totalorder %s34, 0
      %p254 = por %p252, %p253
      %p255 = scmp.ne.s32.totalorder %s241, %s242
      %p256 = scmp.eq.s32.totalorder %s35, 1
      %p257 = por %p255, %p256
      %p259 = scmp.ne.s32.totalorder %s242, %s258
      %p260 = scmp.eq.s32.totalorder %s35, 0
      %p261 = por %p259, %p260
      %p262 = scmp.le.s32.totalorder 1, %s29
      %p263 = scmp.lt.s32.totalorder %s29, 3
      %p264 = pnand %p262, %p263
      %p265 = pneg %p264
      // Predicated region
      $region9: #{tpu_custom_call.1} parent=5 // pred_check
        _
      $region10: #{tpu_custom_call.1} parent=5 // pred_check_branch
        %267 = sbr.rel (%p264) target = $region12
      $region11: #{tpu_custom_call.1} parent=5 // pred_region
        %s268 = ssub.s32 %s29, 1
        // Predicated region
        $region13: #{tpu_custom_call.1} parent=11 // pred_check
          %p269 = pneg %p76
        $region14: #{tpu_custom_call.1} parent=11 // pred_check_branch
          %271 = sbr.rel (%p269) target = $region16
        $region15: #{tpu_custom_call.1} parent=11 // pred_region
          %273 = vsyncadd [#allocation6], 0
          %s274 = sshll.u32 %s1, 4
          %s275 = int_to_ptr.hbm [resolvable:$true] %s274
          %s276 = sshll.u32 [#allocation5], 4
          %s277 = int_to_ptr.vmem [resolvable:$true] %s276
          %282 = dma.hbm_to_vmem [thread:$0]  %s275, 2048, %s277, [#allocation6], 128, 128, 8
        $region16: #{tpu_custom_call.1} parent=11 // pred_fallthru
          _
        // Predicated region
        $region17: #{tpu_custom_call.1} parent=11 // pred_check
          %p283 = pneg %p97
        $region18: #{tpu_custom_call.1} parent=11 // pred_check_branch
          %285 = sbr.rel (%p283) target = $region20
        $region19: #{tpu_custom_call.1} parent=11 // pred_region
          %287 = vsyncadd [#allocation6], 0
          %s288 = sshll.u32 %s2, 4
          %s289 = int_to_ptr.hbm [resolvable:$true] %s288
          %s290 = sshll.u32 [#allocation7], 4
          %s291 = int_to_ptr.vmem [resolvable:$true] %s290
          %296 = dma.hbm_to_vmem [thread:$0]  %s289, 2048, %s291, [#allocation6], 128, 128, 8
        $region20: #{tpu_custom_call.1} parent=11 // pred_fallthru
          _
        // Predicated region
        $region21: #{tpu_custom_call.1} parent=11 // pred_check
          %p297 = pneg %p118
        $region22: #{tpu_custom_call.1} parent=11 // pred_check_branch
          %299 = sbr.rel (%p297) target = $region24
        $region23: #{tpu_custom_call.1} parent=11 // pred_region
          %301 = vsyncadd [#allocation9], 0
          %s302 = sshll.u32 %s3, 4
          %s303 = int_to_ptr.hbm [resolvable:$true] %s302
          %s304 = sshll.u32 [#allocation8], 4
          %s305 = int_to_ptr.vmem [resolvable:$true] %s304
          %310 = dma.hbm_to_vmem [thread:$0]  %s303, 2048, %s305, [#allocation9], 128, 128, 8
        $region24: #{tpu_custom_call.1} parent=11 // pred_fallthru
          _
        // Predicated region
        $region25: #{tpu_custom_call.1} parent=11 // pred_check
          %p311 = pneg %p139
        $region26: #{tpu_custom_call.1} parent=11 // pred_check_branch
          %313 = sbr.rel (%p311) target = $region28
        $region27: #{tpu_custom_call.1} parent=11 // pred_region
          %315 = vsyncadd [#allocation9], 0
          %s316 = sshll.u32 %s4, 4
          %s317 = int_to_ptr.hbm [resolvable:$true] %s316
          %s318 = sshll.u32 [#allocation10], 4
          %s319 = int_to_ptr.vmem [resolvable:$true] %s318
          %324 = dma.hbm_to_vmem [thread:$0]  %s317, 2048, %s319, [#allocation9], 128, 128, 8
        $region28: #{tpu_custom_call.1} parent=11 // pred_fallthru
          _
        // Predicated region
        $region29: #{tpu_custom_call.1} parent=11 // pred_check
          %p325 = pneg %p160
        $region30: #{tpu_custom_call.1} parent=11 // pred_check_branch
          %327 = sbr.rel (%p325) target = $region32
        $region31: #{tpu_custom_call.1} parent=11 // pred_region
          %329 = vsyncadd [#allocation12], 0
          %s330 = sshll.u32 %s5, 4
          %s331 = int_to_ptr.hbm [resolvable:$true] %s330
          %s332 = sshll.u32 [#allocation11], 4
          %s333 = int_to_ptr.vmem [resolvable:$true] %s332
          %338 = dma.hbm_to_vmem [thread:$0]  %s331, 2048, %s333, [#allocation12], 128, 128, 8
        $region32: #{tpu_custom_call.1} parent=11 // pred_fallthru
          _
        // Predicated region
        $region33: #{tpu_custom_call.1} parent=11 // pred_check
          %p339 = pneg %p181
        $region34: #{tpu_custom_call.1} parent=11 // pred_check_branch
          %341 = sbr.rel (%p339) target = $region36
        $region35: #{tpu_custom_call.1} parent=11 // pred_region
          %343 = vsyncadd [#allocation12], 0
          %s344 = sshll.u32 %s6, 4
          %s345 = int_to_ptr.hbm [resolvable:$true] %s344
          %s346 = sshll.u32 [#allocation13], 4
          %s347 = int_to_ptr.vmem [resolvable:$true] %s346
          %352 = dma.hbm_to_vmem [thread:$0]  %s345, 2048, %s347, [#allocation12], 128, 128, 8
        $region36: #{tpu_custom_call.1} parent=11 // pred_fallthru
          _
        // Predicated region
        $region37: #{tpu_custom_call.1} parent=11 // pred_check
          %p353 = pneg %p202
        $region38: #{tpu_custom_call.1} parent=11 // pred_check_branch
          %355 = sbr.rel (%p353) target = $region40
        $region39: #{tpu_custom_call.1} parent=11 // pred_region
          %357 = vsyncadd [#allocation15], 0
          %s359 = sshll.u32 %s7, 4
          %s360 = int_to_ptr.hbm [resolvable:$true] %s359
          %s361 = sshll.u32 [#allocation14], 4
          %s362 = int_to_ptr.vmem [resolvable:$true] %s361
          %364 = dma.hbm_to_vmem [thread:$0]  %s360, 128, %s362, [#allocation15]
        $region40: #{tpu_custom_call.1} parent=11 // pred_fallthru
          _
      $region12: #{tpu_custom_call.1} parent=5 // pred_fallthru
        _
      %p365 = scmp.lt.s32.totalorder %s29, 2
      // Predicated region
      $region41: #{tpu_custom_call.1} parent=5 // pred_check
        %p366 = pneg %p365
      $region42: #{tpu_custom_call.1} parent=5 // pred_check_branch
        %368 = sbr.rel (%p366) target = $region44
      $region43: #{tpu_custom_call.1} parent=5 // pred_region
        // Predicated region
        $region45: #{tpu_custom_call.1} parent=43 // pred_check
          %p369 = pneg %p49
        $region46: #{tpu_custom_call.1} parent=43 // pred_check_branch
          %371 = sbr.rel (%p369) target = $region48
        $region47: #{tpu_custom_call.1} parent=43 // pred_region
          %s372 = sand.u32 %s39, 1
          %s373 = scalar_lea.sflag [#allocation3], %s372
          %s374 = sand.u32 %s39, 1
          %s375 = smul.addr %s374, 8
          %s376 = scalar_lea.vmem [#allocation2], %s375
          %378 = vsyncadd %s373, 0
          %s379 = smul.addr %s29, 8
          %s380 = scalar_lea.hbm %s0, %s379
          %s382 = sshll.u32 %s380, 4
          %s383 = int_to_ptr.hbm [resolvable:$true] %s382
          %s384 = sshll.u32 %s376, 4
          %s385 = int_to_ptr.vmem [resolvable:$true] %s384
          %387 = dma.hbm_to_vmem [thread:$0]  %s383, 128, %s385, %s373
        $region48: #{tpu_custom_call.1} parent=43 // pred_fallthru
          _
      $region44: #{tpu_custom_call.1} parent=5 // pred_fallthru
        _
      %p388 = scmp.le.s32.totalorder 1, %s29
      %p389 = scmp.lt.s32.totalorder %s29, 3
      %p390 = pnand %p388, %p389
      %p391 = pneg %p390
      // Predicated region
      $region49: #{tpu_custom_call.1} parent=5 // pred_check
        _
      $region50: #{tpu_custom_call.1} parent=5 // pred_check_branch
        %393 = sbr.rel (%p390) target = $region52
      $region51: #{tpu_custom_call.1} parent=5 // pred_region
        %s394 = ssub.s32 %s29, 1
        %s395 = sand.u32 %s42, 1
        %s396 = scalar_lea.sflag [#allocation3], %s395
        %s397 = sand.u32 %s42, 1
        %s398 = smul.addr %s397, 8
        %s399 = scalar_lea.vmem [#allocation2], %s398
        // Predicated region
        $region53: #{tpu_custom_call.1} parent=51 // pred_check
          %p400 = pneg %p55
        $region54: #{tpu_custom_call.1} parent=51 // pred_check_branch
          %402 = sbr.rel (%p400) target = $region56
        $region55: #{tpu_custom_call.1} parent=51 // pred_region
          %404 = dma.done %s396, 128
        $region56: #{tpu_custom_call.1} parent=51 // pred_fallthru
          _
        // Predicated region
        $region57: #{tpu_custom_call.1} parent=51 // pred_check
          %p405 = pneg %p76
        $region58: #{tpu_custom_call.1} parent=51 // pred_check_branch
          %407 = sbr.rel (%p405) target = $region60
        $region59: #{tpu_custom_call.1} parent=51 // pred_region
          %409 = dma.done [#allocation6], 2048
        $region60: #{tpu_custom_call.1} parent=51 // pred_fallthru
          _
        // Predicated region
        $region61: #{tpu_custom_call.1} parent=51 // pred_check
          %p410 = pneg %p97
        $region62: #{tpu_custom_call.1} parent=51 // pred_check_branch
          %412 = sbr.rel (%p410) target = $region64
        $region63: #{tpu_custom_call.1} parent=51 // pred_region
          %414 = dma.done [#allocation6], 2048
        $region64: #{tpu_custom_call.1} parent=51 // pred_fallthru
          _
        // Predicated region
        $region65: #{tpu_custom_call.1} parent=51 // pred_check
          %p415 = pneg %p118
        $region66: #{tpu_custom_call.1} parent=51 // pred_check_branch
          %417 = sbr.rel (%p415) target = $region68
        $region67: #{tpu_custom_call.1} parent=51 // pred_region
          %419 = dma.done [#allocation9], 2048
        $region68: #{tpu_custom_call.1} parent=51 // pred_fallthru
          _
        // Predicated region
        $region69: #{tpu_custom_call.1} parent=51 // pred_check
          %p420 = pneg %p139
        $region70: #{tpu_custom_call.1} parent=51 // pred_check_branch
          %422 = sbr.rel (%p420) target = $region72
        $region71: #{tpu_custom_call.1} parent=51 // pred_region
          %424 = dma.done [#allocation9], 2048
        $region72: #{tpu_custom_call.1} parent=51 // pred_fallthru
          _
        // Predicated region
        $region73: #{tpu_custom_call.1} parent=51 // pred_check
          %p425 = pneg %p160
        $region74: #{tpu_custom_call.1} parent=51 // pred_check_branch
          %427 = sbr.rel (%p425) target = $region76
        $region75: #{tpu_custom_call.1} parent=51 // pred_region
          %429 = dma.done [#allocation12], 2048
        $region76: #{tpu_custom_call.1} parent=51 // pred_fallthru
          _
        // Predicated region
        $region77: #{tpu_custom_call.1} parent=51 // pred_check
          %p430 = pneg %p181
        $region78: #{tpu_custom_call.1} parent=51 // pred_check_branch
          %432 = sbr.rel (%p430) target = $region80
        $region79: #{tpu_custom_call.1} parent=51 // pred_region
          %434 = dma.done [#allocation12], 2048
        $region80: #{tpu_custom_call.1} parent=51 // pred_fallthru
          _
        // Predicated region
        $region81: #{tpu_custom_call.1} parent=51 // pred_check
          %p435 = pneg %p202
        $region82: #{tpu_custom_call.1} parent=51 // pred_check_branch
          %437 = sbr.rel (%p435) target = $region84
        $region83: #{tpu_custom_call.1} parent=51 // pred_region
          %439 = dma.done [#allocation15], 128
        $region84: #{tpu_custom_call.1} parent=51 // pred_fallthru
          _
        %s440 = sand.u32 %s42, 1
        %s441 = scalar_lea.sflag [#allocation3], %s440
        %s442 = sand.u32 %s42, 1
        %s443 = smul.addr %s442, 8
        %s444 = scalar_lea.vmem [#allocation2], %s443
        %p445 = pneg %p55
        %p446 = pneg %p52
        %p447 = pneg %p76
        %p448 = pneg %p73
        %p449 = pneg %p97
        %p450 = pneg %p94
        %p451 = pneg %p118
        %p452 = pneg %p115
        %p453 = pneg %p139
        %p454 = pneg %p136
        %p455 = pneg %p160
        %p456 = pneg %p157
        %p457 = pneg %p181
        %p458 = pneg %p178
        %p459 = pneg %p202
        %p460 = pneg %p199
        %p461 = pneg %p228
        %p462 = pneg %p225
        %s463 = sand.u32 %s215, 1
        %s464 = scalar_lea.sflag [#allocation4], %s463
        %s465 = sand.u32 %s215, 1
        %s466 = smul.addr %s465, 8
        %s467 = scalar_lea.vmem [#allocation16], %s466
        %p468 = pneg %p254
        %p469 = pneg %p251
        %s470 = sand.u32 %s241, 1
        %s471 = scalar_lea.sflag [#allocation18], %s470
        %s472 = sand.u32 %s241, 1
        %s473 = smul.addr %s472, 8
        %s474 = scalar_lea.vmem [#allocation17], %s473
        %v475 = vld [vmem:[%s399] sm:$0xff]
        %v476 = vld [vmem:[#allocation5] sm:$0xff]
        %v477 = vld [vmem:[#allocation5 + $0x8] sm:$0xff]
        %v478 = vld [vmem:[#allocation5 + $0x10] sm:$0xff]
        %v479 = vld [vmem:[#allocation5 + $0x18] sm:$0xff]
        %v480 = vld [vmem:[#allocation5 + $0x20] sm:$0xff]
        %v481 = vld [vmem:[#allocation5 + $0x28] sm:$0xff]
        %v482 = vld [vmem:[#allocation5 + $0x30] sm:$0xff]
        %v483 = vld [vmem:[#allocation5 + $0x38] sm:$0xff]
        %v484 = vld [vmem:[#allocation5 + $0x40] sm:$0xff]
        %v485 = vld [vmem:[#allocation5 + $0x48] sm:$0xff]
        %v486 = vld [vmem:[#allocation5 + $0x50] sm:$0xff]
        %v487 = vld [vmem:[#allocation5 + $0x58] sm:$0xff]
        %v488 = vld [vmem:[#allocation5 + $0x60] sm:$0xff]
        %v489 = vld [vmem:[#allocation5 + $0x68] sm:$0xff]
        %v490 = vld [vmem:[#allocation5 + $0x70] sm:$0xff]
        %v491 = vld [vmem:[#allocation5 + $0x78] sm:$0xff]
        %v492 = vld [vmem:[#allocation14] sm:$0x1]
        %v493 = vperm.slane %v492, 0
        %494 = vmatpush.msra.mxu0 %v491
        %495 = vmatpush.msra.mxu0 %v490
        %496 = vmatpush.msra.mxu0 %v489
        %497 = vmatpush.msra.mxu0 %v488
        %498 = vmatpush.msra.mxu0 %v487
        %499 = vmatpush.msra.mxu0 %v486
        %500 = vmatpush.msra.mxu0 %v485
        %501 = vmatpush.msra.mxu0 %v484
        %502 = vmatpush.msra.mxu0 %v483
        %503 = vmatpush.msra.mxu0 %v482
        %504 = vmatpush.msra.mxu0 %v481
        %505 = vmatpush.msra.mxu0 %v480
        %506 = vmatpush.msra.mxu0 %v479
        %507 = vmatpush.msra.mxu0 %v478
        %508 = vmatpush.msra.mxu0 %v477
        %509 = vmatpush.msra.mxu0 %v476
        %510 = vmatmul.f32.gmra.mxu0 %v475
        %v511 = vpop.f32.mrf.mxu0
        %v512 = vadd.f32 %v493, %v511
        %513 = vdwg.mxu0
        %v514 = vtanh.pop %v512
        %v515 = vld [vmem:[#allocation7] sm:$0xff]
        %v516 = vld [vmem:[#allocation7 + $0x8] sm:$0xff]
        %v517 = vld [vmem:[#allocation7 + $0x10] sm:$0xff]
        %v518 = vld [vmem:[#allocation7 + $0x18] sm:$0xff]
        %v519 = vld [vmem:[#allocation7 + $0x20] sm:$0xff]
        %v520 = vld [vmem:[#allocation7 + $0x28] sm:$0xff]
        %v521 = vld [vmem:[#allocation7 + $0x30] sm:$0xff]
        %v522 = vld [vmem:[#allocation7 + $0x38] sm:$0xff]
        %v523 = vld [vmem:[#allocation7 + $0x40] sm:$0xff]
        %v524 = vld [vmem:[#allocation7 + $0x48] sm:$0xff]
        %v525 = vld [vmem:[#allocation7 + $0x50] sm:$0xff]
        %v526 = vld [vmem:[#allocation7 + $0x58] sm:$0xff]
        %v527 = vld [vmem:[#allocation7 + $0x60] sm:$0xff]
        %v528 = vld [vmem:[#allocation7 + $0x68] sm:$0xff]
        %v529 = vld [vmem:[#allocation7 + $0x70] sm:$0xff]
        %v530 = vld [vmem:[#allocation7 + $0x78] sm:$0xff]
        %v531 = vld [vmem:[#allocation14 + $0x1] sm:$0x1]
        %v532 = vperm.slane %v531, 0
        %533 = vmatpush.msra.mxu0 %v530
        %534 = vmatpush.msra.mxu0 %v529
        %535 = vmatpush.msra.mxu0 %v528
        %536 = vmatpush.msra.mxu0 %v527
        %537 = vmatpush.msra.mxu0 %v526
        %538 = vmatpush.msra.mxu0 %v525
        %539 = vmatpush.msra.mxu0 %v524
        %540 = vmatpush.msra.mxu0 %v523
        %541 = vmatpush.msra.mxu0 %v522
        %542 = vmatpush.msra.mxu0 %v521
        %543 = vmatpush.msra.mxu0 %v520
        %544 = vmatpush.msra.mxu0 %v519
        %545 = vmatpush.msra.mxu0 %v518
        %546 = vmatpush.msra.mxu0 %v517
        %547 = vmatpush.msra.mxu0 %v516
        %548 = vmatpush.msra.mxu0 %v515
        %549 = vmatmul.f32.gmra.mxu0 %v514
        %v550 = vpop.f32.mrf.mxu0
        %v551 = vadd.f32 %v532, %v550
        %552 = vdwg.mxu0
        %v553 = vtanh.pop %v551
        %v554 = vld [vmem:[#allocation8] sm:$0xff]
        %v555 = vld [vmem:[#allocation8 + $0x8] sm:$0xff]
        %v556 = vld [vmem:[#allocation8 + $0x10] sm:$0xff]
        %v557 = vld [vmem:[#allocation8 + $0x18] sm:$0xff]
        %v558 = vld [vmem:[#allocation8 + $0x20] sm:$0xff]
        %v559 = vld [vmem:[#allocation8 + $0x28] sm:$0xff]
        %v560 = vld [vmem:[#allocation8 + $0x30] sm:$0xff]
        %v561 = vld [vmem:[#allocation8 + $0x38] sm:$0xff]
        %v562 = vld [vmem:[#allocation8 + $0x40] sm:$0xff]
        %v563 = vld [vmem:[#allocation8 + $0x48] sm:$0xff]
        %v564 = vld [vmem:[#allocation8 + $0x50] sm:$0xff]
        %v565 = vld [vmem:[#allocation8 + $0x58] sm:$0xff]
        %v566 = vld [vmem:[#allocation8 + $0x60] sm:$0xff]
        %v567 = vld [vmem:[#allocation8 + $0x68] sm:$0xff]
        %v568 = vld [vmem:[#allocation8 + $0x70] sm:$0xff]
        %v569 = vld [vmem:[#allocation8 + $0x78] sm:$0xff]
        %v570 = vld [vmem:[#allocation14 + $0x2] sm:$0x1]
        %v571 = vperm.slane %v570, 0
        %572 = vmatpush.msra.mxu0 %v569
        %573 = vmatpush.msra.mxu0 %v568
        %574 = vmatpush.msra.mxu0 %v567
        %575 = vmatpush.msra.mxu0 %v566
        %576 = vmatpush.msra.mxu0 %v565
        %577 = vmatpush.msra.mxu0 %v564
        %578 = vmatpush.msra.mxu0 %v563
        %579 = vmatpush.msra.mxu0 %v562
        %580 = vmatpush.msra.mxu0 %v561
        %581 = vmatpush.msra.mxu0 %v560
        %582 = vmatpush.msra.mxu0 %v559
        %583 = vmatpush.msra.mxu0 %v558
        %584 = vmatpush.msra.mxu0 %v557
        %585 = vmatpush.msra.mxu0 %v556
        %586 = vmatpush.msra.mxu0 %v555
        %587 = vmatpush.msra.mxu0 %v554
        %588 = vmatmul.f32.gmra.mxu0 %v553
        %v589 = vpop.f32.mrf.mxu0
        %v590 = vadd.f32 %v571, %v589
        %591 = vdwg.mxu0
        %v592 = vadd.f32 %v475, %v590
        %593 = vst [vmem:[%s474] sm:$0xff] %v592
        %v594 = vld [vmem:[#allocation10] sm:$0xff]
        %v595 = vld [vmem:[#allocation10 + $0x8] sm:$0xff]
        %v596 = vld [vmem:[#allocation10 + $0x10] sm:$0xff]
        %v597 = vld [vmem:[#allocation10 + $0x18] sm:$0xff]
        %v598 = vld [vmem:[#allocation10 + $0x20] sm:$0xff]
        %v599 = vld [vmem:[#allocation10 + $0x28] sm:$0xff]
        %v600 = vld [vmem:[#allocation10 + $0x30] sm:$0xff]
        %v601 = vld [vmem:[#allocation10 + $0x38] sm:$0xff]
        %v602 = vld [vmem:[#allocation10 + $0x40] sm:$0xff]
        %v603 = vld [vmem:[#allocation10 + $0x48] sm:$0xff]
        %v604 = vld [vmem:[#allocation10 + $0x50] sm:$0xff]
        %v605 = vld [vmem:[#allocation10 + $0x58] sm:$0xff]
        %v606 = vld [vmem:[#allocation10 + $0x60] sm:$0xff]
        %v607 = vld [vmem:[#allocation10 + $0x68] sm:$0xff]
        %v608 = vld [vmem:[#allocation10 + $0x70] sm:$0xff]
        %v609 = vld [vmem:[#allocation10 + $0x78] sm:$0xff]
        %v610 = vld [vmem:[#allocation14 + $0x3] sm:$0x1]
        %v611 = vperm.slane %v610, 0
        %612 = vmatpush.msra.mxu0 %v609
        %613 = vmatpush.msra.mxu0 %v608
        %614 = vmatpush.msra.mxu0 %v607
        %615 = vmatpush.msra.mxu0 %v606
        %616 = vmatpush.msra.mxu0 %v605
        %617 = vmatpush.msra.mxu0 %v604
        %618 = vmatpush.msra.mxu0 %v603
        %619 = vmatpush.msra.mxu0 %v602
        %620 = vmatpush.msra.mxu0 %v601
        %621 = vmatpush.msra.mxu0 %v600
        %622 = vmatpush.msra.mxu0 %v599
        %623 = vmatpush.msra.mxu0 %v598
        %624 = vmatpush.msra.mxu0 %v597
        %625 = vmatpush.msra.mxu0 %v596
        %626 = vmatpush.msra.mxu0 %v595
        %627 = vmatpush.msra.mxu0 %v594
        %628 = vmatmul.f32.gmra.mxu0 %v592
        %v629 = vpop.f32.mrf.mxu0
        %v630 = vadd.f32 %v611, %v629
        %631 = vdwg.mxu0
        %v632 = vtanh.pop %v630
        %v633 = vld [vmem:[#allocation11] sm:$0xff]
        %v634 = vld [vmem:[#allocation11 + $0x8] sm:$0xff]
        %v635 = vld [vmem:[#allocation11 + $0x10] sm:$0xff]
        %v636 = vld [vmem:[#allocation11 + $0x18] sm:$0xff]
        %v637 = vld [vmem:[#allocation11 + $0x20] sm:$0xff]
        %v638 = vld [vmem:[#allocation11 + $0x28] sm:$0xff]
        %v639 = vld [vmem:[#allocation11 + $0x30] sm:$0xff]
        %v640 = vld [vmem:[#allocation11 + $0x38] sm:$0xff]
        %v641 = vld [vmem:[#allocation11 + $0x40] sm:$0xff]
        %v642 = vld [vmem:[#allocation11 + $0x48] sm:$0xff]
        %v643 = vld [vmem:[#allocation11 + $0x50] sm:$0xff]
        %v644 = vld [vmem:[#allocation11 + $0x58] sm:$0xff]
        %v645 = vld [vmem:[#allocation11 + $0x60] sm:$0xff]
        %v646 = vld [vmem:[#allocation11 + $0x68] sm:$0xff]
        %v647 = vld [vmem:[#allocation11 + $0x70] sm:$0xff]
        %v648 = vld [vmem:[#allocation11 + $0x78] sm:$0xff]
        %v649 = vld [vmem:[#allocation14 + $0x4] sm:$0x1]
        %v650 = vperm.slane %v649, 0
        %651 = vmatpush.msra.mxu0 %v648
        %652 = vmatpush.msra.mxu0 %v647
        %653 = vmatpush.msra.mxu0 %v646
        %654 = vmatpush.msra.mxu0 %v645
        %655 = vmatpush.msra.mxu0 %v644
        %656 = vmatpush.msra.mxu0 %v643
        %657 = vmatpush.msra.mxu0 %v642
        %658 = vmatpush.msra.mxu0 %v641
        %659 = vmatpush.msra.mxu0 %v640
        %660 = vmatpush.msra.mxu0 %v639
        %661 = vmatpush.msra.mxu0 %v638
        %662 = vmatpush.msra.mxu0 %v637
        %663 = vmatpush.msra.mxu0 %v636
        %664 = vmatpush.msra.mxu0 %v635
        %665 = vmatpush.msra.mxu0 %v634
        %666 = vmatpush.msra.mxu0 %v633
        %667 = vmatmul.f32.gmra.mxu0 %v632
        %v668 = vpop.f32.mrf.mxu0
        %v669 = vadd.f32 %v650, %v668
        %670 = vdwg.mxu0
        %v671 = vtanh.pop %v669
        %v672 = vld [vmem:[#allocation13] sm:$0xff]
        %v673 = vld [vmem:[#allocation13 + $0x8] sm:$0xff]
        %v674 = vld [vmem:[#allocation13 + $0x10] sm:$0xff]
        %v675 = vld [vmem:[#allocation13 + $0x18] sm:$0xff]
        %v676 = vld [vmem:[#allocation13 + $0x20] sm:$0xff]
        %v677 = vld [vmem:[#allocation13 + $0x28] sm:$0xff]
        %v678 = vld [vmem:[#allocation13 + $0x30] sm:$0xff]
        %v679 = vld [vmem:[#allocation13 + $0x38] sm:$0xff]
        %v680 = vld [vmem:[#allocation13 + $0x40] sm:$0xff]
        %v681 = vld [vmem:[#allocation13 + $0x48] sm:$0xff]
        %v682 = vld [vmem:[#allocation13 + $0x50] sm:$0xff]
        %v683 = vld [vmem:[#allocation13 + $0x58] sm:$0xff]
        %v684 = vld [vmem:[#allocation13 + $0x60] sm:$0xff]
        %v685 = vld [vmem:[#allocation13 + $0x68] sm:$0xff]
        %v686 = vld [vmem:[#allocation13 + $0x70] sm:$0xff]
        %v687 = vld [vmem:[#allocation13 + $0x78] sm:$0xff]
        %v688 = vld [vmem:[#allocation14 + $0x5] sm:$0x1]
        %v689 = vperm.slane %v688, 0
        %690 = vmatpush.msra.mxu0 %v687
        %691 = vmatpush.msra.mxu0 %v686
        %692 = vmatpush.msra.mxu0 %v685
        %693 = vmatpush.msra.mxu0 %v684
        %694 = vmatpush.msra.mxu0 %v683
        %695 = vmatpush.msra.mxu0 %v682
        %696 = vmatpush.msra.mxu0 %v681
        %697 = vmatpush.msra.mxu0 %v680
        %698 = vmatpush.msra.mxu0 %v679
        %699 = vmatpush.msra.mxu0 %v678
        %700 = vmatpush.msra.mxu0 %v677
        %701 = vmatpush.msra.mxu0 %v676
        %702 = vmatpush.msra.mxu0 %v675
        %703 = vmatpush.msra.mxu0 %v674
        %704 = vmatpush.msra.mxu0 %v673
        %705 = vmatpush.msra.mxu0 %v672
        %706 = vmatmul.f32.gmra.mxu0 %v671
        %v707 = vpop.f32.mrf.mxu0
        %v708 = vadd.f32 %v689, %v707
        %709 = vdwg.mxu0
        %710 = vst [vmem:[%s467] sm:$0xff] %v708
        %s711 = sand.u32 %s215, 1
        %s712 = scalar_lea.sflag [#allocation4], %s711
        %s713 = sand.u32 %s215, 1
        %s714 = smul.addr %s713, 8
        %s715 = scalar_lea.vmem [#allocation16], %s714
        %s716 = sand.u32 %s241, 1
        %s717 = scalar_lea.sflag [#allocation18], %s716
        %s718 = sand.u32 %s241, 1
        %s719 = smul.addr %s718, 8
        %s720 = scalar_lea.vmem [#allocation17], %s719
        // Predicated region
        $region85: #{tpu_custom_call.1} parent=51 // pred_check
          %p721 = pneg %p225
        $region86: #{tpu_custom_call.1} parent=51 // pred_check_branch
          %723 = sbr.rel (%p721) target = $region88
        $region87: #{tpu_custom_call.1} parent=51 // pred_region
          %725 = vsyncadd %s712, 0
          %s726 = smul.addr %s34, 8
          %s727 = scalar_lea.hbm %s8, %s726
          %s729 = sshll.u32 %s715, 4
          %s730 = int_to_ptr.vmem [resolvable:$true] %s729
          %s731 = sshll.u32 %s727, 4
          %s732 = int_to_ptr.hbm [resolvable:$true] %s731
          %734 = dma.vmem_to_hbm [thread:$0]  %s730, 128, %s732, %s712
        $region88: #{tpu_custom_call.1} parent=51 // pred_fallthru
          _
        // Predicated region
        $region89: #{tpu_custom_call.1} parent=51 // pred_check
          %p735 = pneg %p251
        $region90: #{tpu_custom_call.1} parent=51 // pred_check_branch
          %737 = sbr.rel (%p735) target = $region92
        $region91: #{tpu_custom_call.1} parent=51 // pred_region
          %739 = vsyncadd %s717, 0
          %s740 = smul.addr %s34, 8
          %s741 = scalar_lea.hbm %s9, %s740
          %s743 = sshll.u32 %s720, 4
          %s744 = int_to_ptr.vmem [resolvable:$true] %s743
          %s745 = sshll.u32 %s741, 4
          %s746 = int_to_ptr.hbm [resolvable:$true] %s745
          %748 = dma.vmem_to_hbm [thread:$0]  %s744, 128, %s746, %s717
        $region92: #{tpu_custom_call.1} parent=51 // pred_fallthru
          _
      $region52: #{tpu_custom_call.1} parent=5 // pred_fallthru
        _
      %p749 = scmp.le.s32.totalorder 2, %s29
      // Predicated region
      $region93: #{tpu_custom_call.1} parent=5 // pred_check
        %p750 = pneg %p749
      $region94: #{tpu_custom_call.1} parent=5 // pred_check_branch
        %752 = sbr.rel (%p750) target = $region96
      $region95: #{tpu_custom_call.1} parent=5 // pred_region
        %s753 = ssub.s32 %s29, 2
        // Predicated region
        $region97: #{tpu_custom_call.1} parent=95 // pred_check
          %p754 = pneg %p231
        $region98: #{tpu_custom_call.1} parent=95 // pred_check_branch
          %756 = sbr.rel (%p754) target = $region100
        $region99: #{tpu_custom_call.1} parent=95 // pred_region
          %s757 = sand.u32 %s216, 1
          %s758 = scalar_lea.sflag [#allocation4], %s757
          %s759 = sand.u32 %s216, 1
          %s760 = smul.addr %s759, 8
          %s761 = scalar_lea.vmem [#allocation16], %s760
          %763 = dma.done %s758, 128
        $region100: #{tpu_custom_call.1} parent=95 // pred_fallthru
          _
        // Predicated region
        $region101: #{tpu_custom_call.1} parent=95 // pred_check
          %p764 = pneg %p257
        $region102: #{tpu_custom_call.1} parent=95 // pred_check_branch
          %766 = sbr.rel (%p764) target = $region104
        $region103: #{tpu_custom_call.1} parent=95 // pred_region
          %s767 = sand.u32 %s242, 1
          %s768 = scalar_lea.sflag [#allocation18], %s767
          %s769 = sand.u32 %s242, 1
          %s770 = smul.addr %s769, 8
          %s771 = scalar_lea.vmem [#allocation17], %s770
          %773 = dma.done %s768, 128
        $region104: #{tpu_custom_call.1} parent=95 // pred_fallthru
          _
      $region96: #{tpu_custom_call.1} parent=5 // pred_fallthru
        _
    $region6: #{tpu_custom_call.1} parent=1 // loop_footer
      %s33 = sadd.s32 1, %s29
    $region7: #{tpu_custom_call.1} parent=1 // loop_footer_branch
      %28 = sbr.rel target = $region3
    $region8: #{tpu_custom_call.1} parent=1 // loop_exit
      _
    %774 = vsyncpa [#allocation3], 1
    %s775 = scalar_lea.sflag [#allocation3], 1
    %776 = vsyncpa %s775, 1
    %777 = vsyncpa [#allocation6], 1
    %778 = vsyncpa [#allocation9], 1
    %779 = vsyncpa [#allocation12], 1
    %780 = vsyncpa [#allocation15], 1
    %781 = vsyncpa [#allocation4], 1
    %s782 = scalar_lea.sflag [#allocation4], 1
    %783 = vsyncpa %s782, 1
    %784 = vsyncpa [#allocation18], 1
    %s785 = scalar_lea.sflag [#allocation18], 1
    %786 = vsyncpa %s785, 1

</llo_original>
